<compile_context>
chip_gen: v6e
topology: v6e:2x2x1
jax: 0.10.0
libtpu: 0.0.40
codegen_flags: <defaults>
</compile_context>

<pallas_src>
import jax
import jax.numpy as jnp
from jax.experimental import pallas as pl
from jax.experimental.pallas import tpu as pltpu


def _pa_kernel(x_ref, w1_ref, bw_ref, b2_ref, o_ref):
    # x_ref : (1, C, T)  channels-first pixel tile (T lane-dense, mult of 128)
    # w1_ref: (H1, C)    1x1 conv #1 weight
    # bw_ref: (H1, 2)    column 0 = bias #1, column 1 = conv #2 weight
    # b2_ref: (1,)       conv #2 bias (SMEM scalar)
    x = x_ref[0].astype(jnp.float32)                       # (C, T)
    w1 = w1_ref[...].astype(jnp.float32)                   # (H1, C)
    bw = bw_ref[...].astype(jnp.float32)                   # (H1, 2)
    b1 = bw[:, 0:1]                                        # (H1, 1)
    w2 = bw[:, 1:2]                                        # (H1, 1)

    # conv1 (1x1): (H1, C) @ (C, T) -> (H1, T), bias + ReLU (MXU, negligible FLOPs)
    h = jnp.dot(w1, x, preferred_element_type=jnp.float32)
    h = jnp.maximum(h + b1, 0.0)

    # conv2 (1x1, out_ch=1): reduce over H1 (XLU), bias, sigmoid (EUP) -> (1, T)
    y = jnp.sum(h * w2, axis=0, keepdims=True) + b2_ref[0]
    y = jax.nn.sigmoid(y)

    # pixel attention applied to every channel (broadcast over C sublanes)
    o_ref[0] = (x * y).astype(o_ref.dtype)


def pa_layer(x_nchw, w1, b1, w2, b2, *, max_tile=2048):
    """x_nchw: (N, C, H, W). PyTorch Conv2d 1x1 parameter shapes:
       w1: (C//8, C, 1, 1), b1: (C//8,), w2: (1, C//8, 1, 1), b2: (1,)."""
    N, C, H, W = x_nchw.shape
    H1 = w1.shape[0]
    HW = H * W

    # Free (contiguous) view: NCHW -> (N, C, H*W); no data movement.
    x3 = x_nchw.reshape(N, C, HW)

    # Lane-dense spatial tile: multiple of 128, capped at max_tile.
    T = min(max_tile, pl.cdiv(HW, 128) * 128)
    HWp = pl.cdiv(HW, T) * T
    if HWp != HW:
        x3 = jnp.pad(x3, ((0, 0), (0, 0), (0, HWp - HW)))

    # Parameters in matmul form.
    w1_m = w1.reshape(H1, C)                                    # (H1, C)
    bw = jnp.stack([b1.reshape(H1), w2.reshape(H1)], axis=1)    # (H1, 2)
    b2_s = b2.reshape(1).astype(jnp.float32)                    # (1,) -> SMEM

    grid = (N, HWp // T)

    out3 = pl.pallas_call(
        _pa_kernel,
        out_shape=jax.ShapeDtypeStruct((N, C, HWp), x_nchw.dtype),
        grid_spec=pltpu.PrefetchScalarGridSpec(
            num_scalar_prefetch=0,
            grid=grid,
            in_specs=[
                pl.BlockSpec((1, C, T), lambda n, s: (n, 0, s)),    # x tile
                pl.BlockSpec((H1, C), lambda n, s: (0, 0)),         # w1
                pl.BlockSpec((H1, 2), lambda n, s: (0, 0)),         # b1 | w2
                pl.BlockSpec(memory_space=pltpu.MemorySpace.SMEM),  # b2 scalar
            ],
            out_specs=pl.BlockSpec((1, C, T), lambda n, s: (n, 0, s)),
        ),
        compiler_params=pltpu.CompilerParams(
            dimension_semantics=("parallel", "parallel")),
    )(x3, w1_m, bw, b2_s)

    if HWp != HW:
        out3 = out3[:, :, :HW]
    return out3.reshape(N, C, H, W)


def _reference(x, w1, b1, w2, b2):
    # Pure-JAX reference matching the PyTorch forward.
    N, C, H, W = x.shape
    H1 = w1.shape[0]
    xf = x.astype(jnp.float32).reshape(N, C, H * W)
    h = jnp.einsum('hc,ncp->nhp', w1.reshape(H1, C).astype(jnp.float32), xf)
    h = jnp.maximum(h + b1.reshape(1, H1, 1), 0.0)
    y = jnp.einsum('h,nhp->np', w2.reshape(H1).astype(jnp.float32), h)
    y = jax.nn.sigmoid(y + b2.reshape(1, 1))[:, None, :]
    out = xf * y
    return out.reshape(N, C, H, W).astype(x.dtype)


if __name__ == "__main__":
    key = jax.random.PRNGKey(0)
    k_x, k_w1, k_b1, k_w2, k_b2 = jax.random.split(key, 5)

    N, C, H, W = 2, 32, 16, 16          # channel must be divisible by 8
    H1 = C // 8

    x = jax.random.normal(k_x, (N, C, H, W), dtype=jnp.float32)
    # Deterministic synthetic parameters (PyTorch Conv2d 1x1 shapes).
    w1 = jax.random.normal(k_w1, (H1, C, 1, 1), dtype=jnp.float32) * 0.1
    b1 = jax.random.normal(k_b1, (H1,), dtype=jnp.float32) * 0.1
    w2 = jax.random.normal(k_w2, (1, H1, 1, 1), dtype=jnp.float32) * 0.1
    b2 = jax.random.normal(k_b2, (1,), dtype=jnp.float32) * 0.1

    out = pa_layer(x, w1, b1, w2, b2)
    out = jax.block_until_ready(out)

    ref = _reference(x, w1, b1, w2, b2)
    assert out.shape == x.shape
    assert jnp.allclose(out, ref, atol=1e-5, rtol=1e-5), "mismatch vs reference"
    print("KERNEL_OK")
</pallas_src>

<mosaic_0001>
module attributes {stable_mosaic.version = 11 : i64} {
  func.func @_pa_kernel(%arg0: i32, %arg1: i32, %arg2: memref<1x32x256xf32, #tpu.memory_space<vmem>>, %arg3: memref<4x32xf32, #tpu.memory_space<vmem>>, %arg4: memref<4x2xf32, #tpu.memory_space<vmem>>, %arg5: memref<1xf32, #tpu.memory_space<smem>>, %arg6: memref<1x32x256xf32, #tpu.memory_space<vmem>>) attributes {dimension_semantics = [#tpu.dimension_semantics<parallel>, #tpu.dimension_semantics<parallel>], iteration_bounds = array<i64: 2, 1>, scalar_prefetch = 0 : i64, scratch_operands = 0 : i64, tpu.core_type = #tpu.core_type<tc>, window_params = [{transform_indices = @transform_0, window_bounds = array<i64: 1, 32, 256>}, {pipeline_mode = #tpu.pipeline_mode<synchronous>, transform_indices = @transform_1, window_bounds = array<i64: 4, 32>}, {pipeline_mode = #tpu.pipeline_mode<synchronous>, transform_indices = @transform_2, window_bounds = array<i64: 4, 2>}, {transform_indices = @transform_3, window_bounds = array<i64: 1>}, {transform_indices = @transform_4, window_bounds = array<i64: 1, 32, 256>}]} {
    %c0 = arith.constant 0 : index
    %c0_0 = arith.constant 0 : index
    %c0_1 = arith.constant 0 : index
    %0 = vector.load %arg2[%c0, %c0_0, %c0_1] : memref<1x32x256xf32, #tpu.memory_space<vmem>>, vector<1x32x256xf32>
    %1 = vector.shape_cast %0 : vector<1x32x256xf32> to vector<32x256xf32>
    %c0_2 = arith.constant 0 : index
    %c0_3 = arith.constant 0 : index
    %2 = vector.load %arg3[%c0_2, %c0_3] : memref<4x32xf32, #tpu.memory_space<vmem>>, vector<4x32xf32>
    %c0_4 = arith.constant 0 : index
    %c0_5 = arith.constant 0 : index
    %3 = vector.load %arg4[%c0_4, %c0_5] : memref<4x2xf32, #tpu.memory_space<vmem>>, vector<4x2xf32>
    %4 = vector.extract_strided_slice %3 {offsets = [0, 0], sizes = [4, 1], strides = [1, 1]} : vector<4x2xf32> to vector<4x1xf32>
    %5 = vector.extract_strided_slice %3 {offsets = [0, 1], sizes = [4, 1], strides = [1, 1]} : vector<4x2xf32> to vector<4x1xf32>
    %cst = arith.constant dense<0.000000e+00> : vector<4x256xf32>
    %6 = tpu.matmul %2, %1, %cst {dimension_numbers = #tpu.dot_dimension_numbers<[1], [0], [0], [1], [0, 0, 1, 1], [], []>} : vector<4x32xf32>, vector<32x256xf32>, vector<4x256xf32> -> vector<4x256xf32>
    %7 = vector.broadcast %4 : vector<4x1xf32> to vector<4x256xf32>
    %8 = arith.addf %6, %7 : vector<4x256xf32>
    %cst_6 = arith.constant 0.000000e+00 : f32
    %9 = vector.broadcast %cst_6 : f32 to vector<4x256xf32>
    %10 = arith.maximumf %8, %9 : vector<4x256xf32>
    %11 = vector.broadcast %5 : vector<4x1xf32> to vector<4x256xf32>
    %12 = arith.mulf %10, %11 : vector<4x256xf32>
    %cst_7 = arith.constant dense<0.000000e+00> : vector<256xf32>
    %13 = vector.multi_reduction <add>, %12, %cst_7 [0] : vector<4x256xf32> to vector<256xf32>
    %14 = vector.shape_cast %13 : vector<256xf32> to vector<1x256xf32>
    %c0_8 = arith.constant 0 : index
    %15 = memref.load %arg5[%c0_8] : memref<1xf32, #tpu.memory_space<smem>>
    %16 = vector.broadcast %15 : f32 to vector<1x256xf32>
    %17 = arith.addf %14, %16 : vector<1x256xf32>
    %18 = arith.negf %17 : vector<1x256xf32>
    %19 = math.exp %18 : vector<1x256xf32>
    %cst_9 = arith.constant 1.000000e+00 : f32
    %20 = vector.broadcast %cst_9 : f32 to vector<1x256xf32>
    %21 = arith.addf %20, %19 : vector<1x256xf32>
    %22 = arith.divf %20, %21 : vector<1x256xf32>
    %23 = vector.broadcast %22 : vector<1x256xf32> to vector<32x256xf32>
    %24 = arith.mulf %1, %23 : vector<32x256xf32>
    %c0_10 = arith.constant 0 : index
    %c0_11 = arith.constant 0 : index
    %c0_12 = arith.constant 0 : index
    %25 = vector.load %arg6[%c0_10, %c0_11, %c0_12] : memref<1x32x256xf32, #tpu.memory_space<vmem>>, vector<1x32x256xf32>
    %26 = vector.shape_cast %25 : vector<1x32x256xf32> to vector<32x256xf32>
    %27 = vector.shape_cast %24 : vector<32x256xf32> to vector<1x32x256xf32>
    tpu.vector_store %arg6[%c0_10, %c0_11, %c0_12], %27 {strides = array<i32>} : memref<1x32x256xf32, #tpu.memory_space<vmem>>, vector<1x32x256xf32>,
    return
  }
  func.func @transform_0(%arg0: i32, %arg1: i32) -> (i32, i32, i32) {
    %c0_i32 = arith.constant 0 : i32
    %c0_i32_0 = arith.constant 0 : i32
    return %arg0, %c0_i32, %arg1 : i32, i32, i32
  }
  func.func @transform_1(%arg0: i32, %arg1: i32) -> (i32, i32) {
    %c0_i32 = arith.constant 0 : i32
    %c0_i32_0 = arith.constant 0 : i32
    %c0_i32_1 = arith.constant 0 : i32
    return %c0_i32, %c0_i32_0 : i32, i32
  }
  func.func @transform_2(%arg0: i32, %arg1: i32) -> (i32, i32) {
    %c0_i32 = arith.constant 0 : i32
    %c0_i32_0 = arith.constant 0 : i32
    %c0_i32_1 = arith.constant 0 : i32
    return %c0_i32, %c0_i32_0 : i32, i32
  }
  func.func @transform_3(%arg0: i32, %arg1: i32) -> i32 {
    %c0_i32 = arith.constant 0 : i32
    %c0_i32_0 = arith.constant 0 : i32
    return %c0_i32 : i32
  }
  func.func @transform_4(%arg0: i32, %arg1: i32) -> (i32, i32, i32) {
    %c0_i32 = arith.constant 0 : i32
    %c0_i32_0 = arith.constant 0 : i32
    return %arg0, %c0_i32, %arg1 : i32, i32, i32
  }
}

</mosaic_0001>

<llo_original>
// kernel: tpu_custom_call.1
$region0: #{tpu_custom_call.1}
  #allocation0 [shape = 'u32[]', space=smem, size = 0x4, offset = 0x4, fixed_abs, tag = 'smem constant byte address 0x4 - core index']
  #allocation1 [shape = 'u32[144,128]{1,0:T(1,128)}', space=vmem, size = 0x12000, scoped, tag = 'internal scratch']
  #allocation2 [shape = 'f32[1]{0:T(128)S(6)}', space=smem, size = 0x200, scoped, tag = 'scoped memory for tpu_custom_call.1']
  %s0 = inlined_call_operand.hbm [shape: f32[2,32,256], index: 0, kind: input, shape index: {}]
  %s1 = inlined_call_operand.vmem [shape: f32[4,32], index: 1, kind: input, shape index: {}]
  %s2 = inlined_call_operand.vmem [shape: f32[4,2], index: 2, kind: input, shape index: {}]
  %s3 = inlined_call_operand.<no memory space> [shape: f32[1], index: 3, kind: input, shape index: {}]
  %s4 = inlined_call_operand.hbm [shape: f32[2,32,256], index: 4, kind: output, shape index: {}]
  %s5 = sld [smem:[#allocation0]]
  $region53: #{tpu_custom_call.1} parent=0
    _
  %s7 = ssub.s32 1, %s5
  %s8 = scalar_select 0, %s7, %s5
  %9 = sst [smem:[#allocation2]] %s3
  $region1: #{tpu_custom_call.1} parent=0
    #allocation3 [shape = 'u8[65536]{0}', space=vmem, size = 0x10000, scoped, tag = 'input window, operand 0']
    #allocation4 [shape = 's32[2]{0}', space=sflag, size = 0x8, scoped, tag = 'scoped memory for tpu_custom_call.1']
    #allocation5 [shape = 's32[2]{0}', space=sflag, size = 0x8, scoped, tag = 'scoped memory for tpu_custom_call.1']
    #allocation6 [shape = 'u8[65536]{0}', space=vmem, size = 0x10000, scoped, tag = 'output window, operand 0']
    %10 = vsyncpa [#allocation4], 0
    %s11 = scalar_lea.sflag [#allocation4], 1
    %12 = vsyncpa %s11, 0
    %13 = vsyncpa [#allocation5], 0
    %s14 = scalar_lea.sflag [#allocation5], 1
    %15 = vsyncpa %s14, 0
    loop: start=0, step=1, limit=4
    $region2: #{tpu_custom_call.1} parent=1 // loop_pre_header
      _
    $region3: #{tpu_custom_call.1} parent=1 // loop_header
      %s17 = sphi 0, %s21
      %p18 = scmp.ge.s32.totalorder %s17, 4
      %s24 = sphi 0, %s36
      %s25 = sphi 0, %s32
      %s26 = sphi 0, %s24
      %s27 = sphi 0, %s25
      %s28 = sphi 0, %s26
      %s29 = sphi 0, %s27
      %s41 = sphi 0, %s43
      %s44 = sphi 0, %s41
      %s45 = sphi 0, %s44
      %s61 = sphi 0, %s45
      %s65 = sphi 0, %s65
      %s67 = sphi 0, %s65
      %s68 = sphi 0, %s67
      %s82 = sphi 0, %s68
      %s86 = sphi 0, %s86
      %s88 = sphi 0, %s86
      %s89 = sphi 0, %s88
      %s103 = sphi 0, %s89
      %s107 = sphi 0, %s107
      %s109 = sphi 0, %s107
      %s110 = sphi 0, %s109
      %s124 = sphi 0, %s110
      %s132 = sphi 0, %s134
      %s135 = sphi 0, %s132
      %s136 = sphi 0, %s135
      %s152 = sphi 0, %s136
    $region4: #{tpu_custom_call.1} parent=1 // loop_header_branch
      %20 = sbr.rel (%p18) target = $region8
    $region5: #{tpu_custom_call.1} parent=1 // loop_body
      %s22 = ssub.s32 %s17, 1
      %s23 = ssub.s32 %s17, 2
      %s30 = sadd.s32 1, %s25
      %p31 = scmp.ge.s32.totalorder %s30, 1
      %s32 = scalar_select %p31, 0, %s30
      %s33 = sadd.s32 1, %s24
      %s34 = scalar_select %p31, %s33, %s24
      %p35 = scmp.ge.s32.totalorder %s34, 2
      %s36 = scalar_select %p35, 0, %s34
      %s37 = ssub.s32 %s24, %s36
      %s38 = ssub.s32 %s25, %s32
      %s39 = sor.u32 %s37, %s38
      %p40 = scmp.eq.s32.totalorder %s39, 0
      %s42 = sadd.s32 %s41, 1
      %s43 = scalar_select %p40, %s41, %s42
      %p46 = pneg %p40
      %p47 = scmp.eq.s32.totalorder %s17, 1
      %p48 = por %p46, %p47
      %p49 = scmp.ne.s32.totalorder %s41, %s44
      %p50 = scmp.eq.s32.totalorder %s17, 0
      %p51 = por %p49, %p50
      %p52 = scmp.ne.s32.totalorder %s41, %s44
      %p53 = scmp.eq.s32.totalorder %s22, 1
      %p54 = por %p52, %p53
      %p55 = scmp.ne.s32.totalorder %s44, %s45
      %p56 = scmp.eq.s32.totalorder %s22, 0
      %p57 = por %p55, %p56
      %p58 = scmp.ne.s32.totalorder %s44, %s45
      %p59 = scmp.eq.s32.totalorder %s23, 1
      %p60 = por %p58, %p59
      %p62 = scmp.ne.s32.totalorder %s45, %s61
      %p63 = scmp.eq.s32.totalorder %s23, 0
      %p64 = por %p62, %p63
      %s66 = sadd.s32 %s65, 1
      %p69 = scmp.eq.s32.totalorder %s17, 1
      %p70 = scmp.ne.s32.totalorder %s65, %s67
      %p71 = scmp.eq.s32.totalorder %s17, 0
      %p72 = por %p70, %p71
      %p73 = scmp.ne.s32.totalorder %s65, %s67
      %p74 = scmp.eq.s32.totalorder %s22, 1
      %p75 = por %p73, %p74
      %p76 = scmp.ne.s32.totalorder %s67, %s68
      %p77 = scmp.eq.s32.totalorder %s22, 0
      %p78 = por %p76, %p77
      %p79 = scmp.ne.s32.totalorder %s67, %s68
      %p80 = scmp.eq.s32.totalorder %s23, 1
      %p81 = por %p79, %p80
      %p83 = scmp.ne.s32.totalorder %s68, %s82
      %p84 = scmp.eq.s32.totalorder %s23, 0
      %p85 = por %p83, %p84
      %s87 = sadd.s32 %s86, 1
      %p90 = scmp.eq.s32.totalorder %s17, 1
      %p91 = scmp.ne.s32.totalorder %s86, %s88
      %p92 = scmp.eq.s32.totalorder %s17, 0
      %p93 = por %p91, %p92
      %p94 = scmp.ne.s32.totalorder %s86, %s88
      %p95 = scmp.eq.s32.totalorder %s22, 1
      %p96 = por %p94, %p95
      %p97 = scmp.ne.s32.totalorder %s88, %s89
      %p98 = scmp.eq.s32.totalorder %s22, 0
      %p99 = por %p97, %p98
      %p100 = scmp.ne.s32.totalorder %s88, %s89
      %p101 = scmp.eq.s32.totalorder %s23, 1
      %p102 = por %p100, %p101
      %p104 = scmp.ne.s32.totalorder %s89, %s103
      %p105 = scmp.eq.s32.totalorder %s23, 0
      %p106 = por %p104, %p105
      %s108 = sadd.s32 %s107, 1
      %p111 = scmp.eq.s32.totalorder %s17, 1
      %p112 = scmp.ne.s32.totalorder %s107, %s109
      %p113 = scmp.eq.s32.totalorder %s17, 0
      %p114 = por %p112, %p113
      %p115 = scmp.ne.s32.totalorder %s107, %s109
      %p116 = scmp.eq.s32.totalorder %s22, 1
      %p117 = por %p115, %p116
      %p118 = scmp.ne.s32.totalorder %s109, %s110
      %p119 = scmp.eq.s32.totalorder %s22, 0
      %p120 = por %p118, %p119
      %p121 = scmp.ne.s32.totalorder %s109, %s110
      %p122 = scmp.eq.s32.totalorder %s23, 1
      %p123 = por %p121, %p122
      %p125 = scmp.ne.s32.totalorder %s110, %s124
      %p126 = scmp.eq.s32.totalorder %s23, 0
      %p127 = por %p125, %p126
      %s128 = ssub.s32 %s24, %s36
      %s129 = ssub.s32 %s25, %s32
      %s130 = sor.u32 %s128, %s129
      %p131 = scmp.eq.s32.totalorder %s130, 0
      %s133 = sadd.s32 %s132, 1
      %s134 = scalar_select %p131, %s132, %s133
      %p137 = pneg %p131
      %p138 = scmp.eq.s32.totalorder %s17, 1
      %p139 = por %p137, %p138
      %p140 = scmp.ne.s32.totalorder %s132, %s135
      %p141 = scmp.eq.s32.totalorder %s17, 0
      %p142 = por %p140, %p141
      %p143 = scmp.ne.s32.totalorder %s132, %s135
      %p144 = scmp.eq.s32.totalorder %s22, 1
      %p145 = por %p143, %p144
      %p146 = scmp.ne.s32.totalorder %s135, %s136
      %p147 = scmp.eq.s32.totalorder %s22, 0
      %p148 = por %p146, %p147
      %p149 = scmp.ne.s32.totalorder %s135, %s136
      %p150 = scmp.eq.s32.totalorder %s23, 1
      %p151 = por %p149, %p150
      %p153 = scmp.ne.s32.totalorder %s136, %s152
      %p154 = scmp.eq.s32.totalorder %s23, 0
      %p155 = por %p153, %p154
      %p156 = scmp.le.s32.totalorder 1, %s17
      %p157 = scmp.lt.s32.totalorder %s17, 3
      %p158 = pnand %p156, %p157
      %p159 = pneg %p158
      // Predicated region
      $region9: #{tpu_custom_call.1} parent=5 // pred_check
        _
      $region10: #{tpu_custom_call.1} parent=5 // pred_check_branch
        %161 = sbr.rel (%p158) target = $region12
      $region11: #{tpu_custom_call.1} parent=5 // pred_region
        %s162 = ssub.s32 %s17, 1
        // Predicated region
        $region13: #{tpu_custom_call.1} parent=11 // pred_check
          %p163 = pneg %p78
        $region14: #{tpu_custom_call.1} parent=11 // pred_check_branch
          %165 = sbr.rel (%p163) target = $region16
        $region15: #{tpu_custom_call.1} parent=11 // pred_region
          _
        $region16: #{tpu_custom_call.1} parent=11 // pred_fallthru
          _
        // Predicated region
        $region17: #{tpu_custom_call.1} parent=11 // pred_check
          %p166 = pneg %p99
        $region18: #{tpu_custom_call.1} parent=11 // pred_check_branch
          %168 = sbr.rel (%p166) target = $region20
        $region19: #{tpu_custom_call.1} parent=11 // pred_region
          _
        $region20: #{tpu_custom_call.1} parent=11 // pred_fallthru
          _
        // Predicated region
        $region21: #{tpu_custom_call.1} parent=11 // pred_check
          %p169 = pneg %p120
        $region22: #{tpu_custom_call.1} parent=11 // pred_check_branch
          %171 = sbr.rel (%p169) target = $region24
        $region23: #{tpu_custom_call.1} parent=11 // pred_region
          _
        $region24: #{tpu_custom_call.1} parent=11 // pred_fallthru
          _
      $region12: #{tpu_custom_call.1} parent=5 // pred_fallthru
        _
      %p172 = scmp.lt.s32.totalorder %s17, 2
      // Predicated region
      $region25: #{tpu_custom_call.1} parent=5 // pred_check
        %p173 = pneg %p172
      $region26: #{tpu_custom_call.1} parent=5 // pred_check_branch
        %175 = sbr.rel (%p173) target = $region28
      $region27: #{tpu_custom_call.1} parent=5 // pred_region
        // Predicated region
        $region29: #{tpu_custom_call.1} parent=27 // pred_check
          %p176 = pneg %p51
        $region30: #{tpu_custom_call.1} parent=27 // pred_check_branch
          %178 = sbr.rel (%p176) target = $region32
        $region31: #{tpu_custom_call.1} parent=27 // pred_region
          %s179 = sand.u32 %s41, 1
          %s180 = scalar_lea.sflag [#allocation4], %s179
          %s181 = sand.u32 %s41, 1
          %s182 = smul.addr %s181, 64
          %s183 = scalar_lea.vmem [#allocation3], %s182
          %s184 = smul.u32 2, %s25
          %s186 = ssub.s32 1024, 1024
          %187 = vsyncadd %s180, %s186
          %s188 = smul.addr %s24, 8
          %s189 = sadd.s32 %s184, %s188
          %s190 = smul.addr %s189, 128
          %s191 = scalar_lea.hbm %s0, %s190
          %s192 = sshll.u32 %s183, 4
          %s193 = int_to_ptr.vmem [resolvable:$true] %s192
          %198 = dma.hbm_to_vmem [thread:$0]  %s191, 1024, %s193, %s180, 256, 256, 16
        $region32: #{tpu_custom_call.1} parent=27 // pred_fallthru
          _
      $region28: #{tpu_custom_call.1} parent=5 // pred_fallthru
        _
      %p199 = scmp.le.s32.totalorder 1, %s17
      %p200 = scmp.lt.s32.totalorder %s17, 3
      %p201 = pnand %p199, %p200
      %p202 = pneg %p201
      // Predicated region
      $region33: #{tpu_custom_call.1} parent=5 // pred_check
        _
      $region34: #{tpu_custom_call.1} parent=5 // pred_check_branch
        %204 = sbr.rel (%p201) target = $region36
      $region35: #{tpu_custom_call.1} parent=5 // pred_region
        %s205 = ssub.s32 %s17, 1
        %s206 = sand.u32 %s44, 1
        %s207 = scalar_lea.sflag [#allocation4], %s206
        %s208 = sand.u32 %s44, 1
        %s209 = smul.addr %s208, 64
        %s210 = scalar_lea.vmem [#allocation3], %s209
        // Predicated region
        $region37: #{tpu_custom_call.1} parent=35 // pred_check
          %p211 = pneg %p57
        $region38: #{tpu_custom_call.1} parent=35 // pred_check_branch
          %213 = sbr.rel (%p211) target = $region40
        $region39: #{tpu_custom_call.1} parent=35 // pred_region
          %214 = dma.done %s207, 1024
        $region40: #{tpu_custom_call.1} parent=35 // pred_fallthru
          _
        %s215 = sand.u32 %s44, 1
        %s216 = scalar_lea.sflag [#allocation4], %s215
        %s217 = sand.u32 %s44, 1
        %s218 = smul.addr %s217, 64
        %s219 = scalar_lea.vmem [#allocation3], %s218
        %p220 = pneg %p57
        %p221 = pneg %p54
        %p222 = pneg %p78
        %p223 = pneg %p75
        %p224 = pneg %p99
        %p225 = pneg %p96
        %p226 = pneg %p120
        %p227 = pneg %p117
        %p228 = pneg %p148
        %p229 = pneg %p145
        %s230 = sand.u32 %s135, 1
        %s231 = scalar_lea.sflag [#allocation5], %s230
        %s232 = sand.u32 %s135, 1
        %s233 = smul.addr %s232, 64
        %s234 = scalar_lea.vmem [#allocation6], %s233
        %s235 = smul.u32 2, %s27
        %s236 = smul.u32 2, %s27
        %v237 = vld [vmem:[%s210] sm:$0xff]
        %v238 = vld [vmem:[%s210 + $0x8] sm:$0xff]
        %v239 = vld [vmem:[%s210 + $0x10] sm:$0xff]
        %v240 = vld [vmem:[%s210 + $0x18] sm:$0xff]
        %v241 = vld [vmem:[%s210 + $0x20] sm:$0xff]
        %v242 = vld [vmem:[%s210 + $0x28] sm:$0xff]
        %v243 = vld [vmem:[%s210 + $0x30] sm:$0xff]
        %v244 = vld [vmem:[%s210 + $0x38] sm:$0xff]
        %v245 = vld [vmem:[%s1] sm:$0xf]
        %v246 = vld [vmem:[%s2] sm:$0xf]
        %248 = vset.pattern.permute.xlu0 0
        %249 = vperm.xlu0 %248, %v246
        %v250 = vpop.permute.xlu0 %249
        %vm252 = vcmask 261120
        %v254 = vsel %vm252, %v245, 0
        %256 = vmatprep.subr.mxu0 0.0
        %257 = vmatpush1.msra.mxu0 0.0
        %258 = vmatprep.subr.mxu0 0.0
        %259 = vmatpush1.msra.mxu0 0.0
        %260 = vmatprep.subr.mxu0 0.0
        %261 = vmatpush1.msra.mxu0 0.0
        %262 = vmatprep.subr.mxu0 0.0
        %263 = vmatpush1.msra.mxu0 0.0
        %264 = vmatprep.subr.mxu0 0.0
        %265 = vmatpush1.msra.mxu0 0.0
        %266 = vmatprep.subr.mxu0 0.0
        %267 = vmatpush1.msra.mxu0 0.0
        %268 = vmatprep.subr.mxu0 0.0
        %269 = vmatpush1.msra.mxu0 0.0
        %270 = vmatprep.subr.mxu0 0.0
        %271 = vmatpush1.msra.mxu0 0.0
        %272 = vmatprep.subr.mxu0 0.0
        %273 = vmatpush1.msra.mxu0 0.0
        %274 = vmatprep.subr.mxu0 0.0
        %275 = vmatpush1.msra.mxu0 0.0
        %276 = vmatprep.subr.mxu0 0.0
        %277 = vmatpush1.msra.mxu0 0.0
        %278 = vmatprep.subr.mxu0 0.0
        %279 = vmatpush1.msra.mxu0 0.0
        %280 = vmatprep.subr.mxu0 %v244
        %281 = vmatpush1.msra.mxu0 %v243
        %282 = vmatprep.subr.mxu0 %v242
        %283 = vmatpush1.msra.mxu0 %v241
        %284 = vmatprep.subr.mxu0 %v240
        %285 = vmatpush1.msra.mxu0 %v239
        %286 = vmatprep.subr.mxu0 %v238
        %287 = vmatpush1.msra.mxu0 %v237
        %288 = vmatprep.subr.mxu0 0.0
        %289 = vmatpush2.msra.mxu0 0.0
        %290 = vmatprep.subr.mxu0 0.0
        %291 = vmatpush2.msra.mxu0 0.0
        %292 = vmatprep.subr.mxu0 0.0
        %293 = vmatpush2.msra.mxu0 0.0
        %294 = vmatprep.subr.mxu0 0.0
        %295 = vmatpush2.msra.mxu0 0.0
        %296 = vmatprep.subr.mxu0 0.0
        %297 = vmatpush2.msra.mxu0 0.0
        %298 = vmatprep.subr.mxu0 0.0
        %299 = vmatpush2.msra.mxu0 0.0
        %300 = vmatprep.subr.mxu0 0.0
        %301 = vmatpush2.msra.mxu0 0.0
        %302 = vmatprep.subr.mxu0 0.0
        %303 = vmatpush2.msra.mxu0 0.0
        %304 = vmatprep.subr.mxu0 0.0
        %305 = vmatpush2.msra.mxu0 0.0
        %306 = vmatprep.subr.mxu0 0.0
        %307 = vmatpush2.msra.mxu0 0.0
        %308 = vmatprep.subr.mxu0 0.0
        %309 = vmatpush2.msra.mxu0 0.0
        %310 = vmatprep.subr.mxu0 0.0
        %311 = vmatpush2.msra.mxu0 0.0
        %312 = vmatprep.subr.mxu0 0.0
        %313 = vmatpush2.msra.mxu0 0.0
        %314 = vmatprep.subr.mxu0 0.0
        %315 = vmatpush2.msra.mxu0 0.0
        %316 = vmatprep.subr.mxu0 0.0
        %317 = vmatpush2.msra.mxu0 0.0
        %318 = vmatprep.subr.mxu0 0.0
        %319 = vmatpush2.msra.mxu0 0.0
        %320 = vmatprep.mubr.f32.mxu0 0.0
        %321 = vmatmul.mubr.f32.gmra.mxu0 %v254
        %v322 = vpop.f32.mrf.mxu0
        %v323 = vadd.f32 %v250, %v322
        %v324 = vpop.f32.mrf.mxu0
        %v325 = vadd.f32 %v250, %v324
        %326 = vdwg.mxu0
        %v327 = vmax.f32 %v323, 0.0
        %v328 = vmax.f32 %v325, 0.0
        %329 = vset.pattern.permute.xlu0 1
        %330 = vperm.xlu0 %329, %v246
        %v331 = vpop.permute.xlu0 %330
        %v333 = vmul.f32 %v327, %v331
        %v334 = vmul.f32 %v328, %v331
        %vm335 = vcmask 1043456
        %v336 = vsel %vm335, %v333, 0.0
        %v337 = vrot.slane %v336, 4
        %v338 = vadd.f32 %v336, %v337
        %v339 = vrot.slane %v338, 2
        %v340 = vadd.f32 %v338, %v339
        %v341 = vrot.slane %v340, 1
        %v342 = vadd.f32 %v340, %v341
        %v343 = vsel %vm335, %v334, 0.0
        %v344 = vrot.slane %v343, 4
        %v345 = vadd.f32 %v343, %v344
        %v346 = vrot.slane %v345, 2
        %v347 = vadd.f32 %v345, %v346
        %v348 = vrot.slane %v347, 1
        %v349 = vadd.f32 %v347, %v348
        %s350 = sld [smem:[#allocation2]]
        %v351 = vstv %s350
        %v352 = vadd.f32 %v342, %v351
        %v353 = vadd.f32 %v349, %v351
        %v354 = vxor.u32 %v352, 2147483648
        %v355 = vxor.u32 %v353, 2147483648
        %v356 = vmul.f32 %v354, 1.442695
        %v357 = vpow.pop %v356
        %v358 = vmul.f32 %v355, 1.442695
        %v359 = vpow.pop %v358
        %v360 = vadd.f32 %v357, 1.0
        %v361 = vadd.f32 %v359, 1.0
        %v362 = vrcp.pop %v360
        %v363 = vmul.f32 1.0, %v362
        %v364 = vrcp.pop %v361
        %v365 = vmul.f32 1.0, %v364
        %v366 = vmul.f32 %v237, %v363
        %v367 = vmul.f32 %v238, %v365
        %v368 = vmul.f32 %v239, %v363
        %v369 = vmul.f32 %v240, %v365
        %v370 = vmul.f32 %v241, %v363
        %v371 = vmul.f32 %v242, %v365
        %v372 = vmul.f32 %v243, %v363
        %v373 = vmul.f32 %v244, %v365
        %374 = vst [vmem:[%s234] sm:$0xff] %v366
        %375 = vst [vmem:[%s234 + $0x8] sm:$0xff] %v367
        %376 = vst [vmem:[%s234 + $0x10] sm:$0xff] %v368
        %377 = vst [vmem:[%s234 + $0x18] sm:$0xff] %v369
        %378 = vst [vmem:[%s234 + $0x20] sm:$0xff] %v370
        %379 = vst [vmem:[%s234 + $0x28] sm:$0xff] %v371
        %380 = vst [vmem:[%s234 + $0x30] sm:$0xff] %v372
        %381 = vst [vmem:[%s234 + $0x38] sm:$0xff] %v373
        %s382 = sand.u32 %s135, 1
        %s383 = scalar_lea.sflag [#allocation5], %s382
        %s384 = sand.u32 %s135, 1
        %s385 = smul.addr %s384, 64
        %s386 = scalar_lea.vmem [#allocation6], %s385
        // Predicated region
        $region41: #{tpu_custom_call.1} parent=35 // pred_check
          %p387 = pneg %p145
        $region42: #{tpu_custom_call.1} parent=35 // pred_check_branch
          %389 = sbr.rel (%p387) target = $region44
        $region43: #{tpu_custom_call.1} parent=35 // pred_region
          %s390 = smul.u32 2, %s27
          %s392 = ssub.s32 1024, 1024
          %393 = vsyncadd %s383, %s392
          %s394 = smul.addr %s26, 8
          %s395 = sadd.s32 %s390, %s394
          %s396 = smul.addr %s395, 128
          %s397 = scalar_lea.hbm %s4, %s396
          %s398 = sshll.u32 %s386, 4
          %s399 = int_to_ptr.vmem [resolvable:$true] %s398
          %404 = dma.vmem_to_hbm [thread:$0]  %s399, 1024, %s397, %s383, 256, 256, 16
        $region44: #{tpu_custom_call.1} parent=35 // pred_fallthru
          _
      $region36: #{tpu_custom_call.1} parent=5 // pred_fallthru
        _
      %p405 = scmp.le.s32.totalorder 2, %s17
      // Predicated region
      $region45: #{tpu_custom_call.1} parent=5 // pred_check
        %p406 = pneg %p405
      $region46: #{tpu_custom_call.1} parent=5 // pred_check_branch
        %408 = sbr.rel (%p406) target = $region48
      $region47: #{tpu_custom_call.1} parent=5 // pred_region
        %s409 = ssub.s32 %s17, 2
        // Predicated region
        $region49: #{tpu_custom_call.1} parent=47 // pred_check
          %p410 = pneg %p151
        $region50: #{tpu_custom_call.1} parent=47 // pred_check_branch
          %412 = sbr.rel (%p410) target = $region52
        $region51: #{tpu_custom_call.1} parent=47 // pred_region
          %s413 = sand.u32 %s136, 1
          %s414 = scalar_lea.sflag [#allocation5], %s413
          %s415 = sand.u32 %s136, 1
          %s416 = smul.addr %s415, 64
          %s417 = scalar_lea.vmem [#allocation6], %s416
          %418 = dma.done %s414, 1024
        $region52: #{tpu_custom_call.1} parent=47 // pred_fallthru
          _
      $region48: #{tpu_custom_call.1} parent=5 // pred_fallthru
        _
    $region6: #{tpu_custom_call.1} parent=1 // loop_footer
      %s21 = sadd.s32 1, %s17
    $region7: #{tpu_custom_call.1} parent=1 // loop_footer_branch
      %16 = sbr.rel target = $region3
    $region8: #{tpu_custom_call.1} parent=1 // loop_exit
      _
    %419 = vsyncpa [#allocation4], 1
    %s420 = scalar_lea.sflag [#allocation4], 1
    %421 = vsyncpa %s420, 1
    %422 = vsyncpa [#allocation5], 1
    %s423 = scalar_lea.sflag [#allocation5], 1
    %424 = vsyncpa %s423, 1

</llo_original>
